<compile_context>
chip_gen: v5e
topology: v5e:2x2
jax: 0.10.0
libtpu: 0.0.40
codegen_flags: <defaults>
</compile_context>

<pallas_src>
import math

import jax
import jax.numpy as jnp
from jax.experimental import pallas as pl
from jax.experimental.pallas import tpu as pltpu

# ---------------------------- config (small demo shapes) ----------------------------
B = 2            # batch_size
S = 8            # seq_len
D_MODEL = 64     # embedding_dim (matches the hybrid model's d_model)
MAX_LEN = 5000   # PyTorch default max_len for the pe buffer


# ------------------------------------ kernel ----------------------------------------
def posenc_kernel(x_ref, pe_ref, o_ref):
    """out = x + pe, broadcast over the batch dim.

    x_ref:  [B, S, D]  (VMEM)
    pe_ref: [1, S, D]  (VMEM)  -- pe[:seq_len].transpose(0, 1), same layout as PyTorch
    o_ref:  [B, S, D]  (VMEM)
    """
    o_ref[...] = x_ref[...] + pe_ref[...]


# ---------------------------------- pe buffer ---------------------------------------
def make_pe_table(d_model: int, max_len: int = MAX_LEN) -> jnp.ndarray:
    """Sinusoidal positional-encoding buffer, shape [max_len, 1, d_model] (as in PyTorch)."""
    position = jnp.arange(max_len, dtype=jnp.float32)[:, None]
    div_term = jnp.exp(
        jnp.arange(0, d_model, 2, dtype=jnp.float32) * (-math.log(10000.0) / d_model)
    )
    pe = jnp.zeros((max_len, 1, d_model), jnp.float32)
    pe = pe.at[:, 0, 0::2].set(jnp.sin(position * div_term))
    pe = pe.at[:, 0, 1::2].set(jnp.cos(position * div_term))
    return pe


# ----------------------------------- wrapper ----------------------------------------
def positional_encoding(x: jnp.ndarray, pe_table: jnp.ndarray) -> jnp.ndarray:
    """x: [batch, seq_len, d_model]  ->  x + pe[:seq_len].transpose(0, 1)."""
    b, s, d = x.shape
    # Slice the buffer to the active sequence length and move to [1, S, D]
    # (pe[:seq_len].transpose(0, 1) in the reference). Only this slice is DMA'd.
    pe_slice = jnp.transpose(pe_table[:s], (1, 0, 2))

    return pl.pallas_call(
        posenc_kernel,
        out_shape=jax.ShapeDtypeStruct((b, s, d), x.dtype),
        in_specs=[
            pl.BlockSpec(memory_space=pltpu.MemorySpace.VMEM),
            pl.BlockSpec(memory_space=pltpu.MemorySpace.VMEM),
        ],
        out_specs=pl.BlockSpec(memory_space=pltpu.MemorySpace.VMEM),
    )(x, pe_slice)


# ------------------------------------- main -----------------------------------------
if __name__ == "__main__":
    key = jax.random.PRNGKey(0)
    x = jax.random.normal(key, (B, S, D_MODEL), jnp.float32)

    pe_table = make_pe_table(D_MODEL, MAX_LEN)

    out = positional_encoding(x, pe_table)
    out = jax.block_until_ready(out)

    # Reference (pure JAX) check of the forward-pass semantics.
    ref = x + jnp.transpose(pe_table[:S], (1, 0, 2))
    assert out.shape == (B, S, D_MODEL), out.shape
    assert bool(jnp.all(jnp.isfinite(out)))
    assert bool(jnp.allclose(out, ref, atol=1e-6, rtol=1e-6))

    print("KERNEL_OK")
</pallas_src>

<mosaic_0001>
module attributes {stable_mosaic.version = 11 : i64} {
  func.func @posenc_kernel(%arg0: memref<2x8x64xf32, #tpu.memory_space<vmem>>, %arg1: memref<1x8x64xf32, #tpu.memory_space<vmem>>, %arg2: memref<2x8x64xf32, #tpu.memory_space<vmem>>) attributes {dimension_semantics = [], scalar_prefetch = 0 : i64, scratch_operands = 0 : i64, tpu.core_type = #tpu.core_type<tc>} {
    %c0 = arith.constant 0 : index
    %c0_0 = arith.constant 0 : index
    %c0_1 = arith.constant 0 : index
    %0 = vector.load %arg0[%c0, %c0_0, %c0_1] : memref<2x8x64xf32, #tpu.memory_space<vmem>>, vector<2x8x64xf32>
    %c0_2 = arith.constant 0 : index
    %c0_3 = arith.constant 0 : index
    %c0_4 = arith.constant 0 : index
    %1 = vector.load %arg1[%c0_2, %c0_3, %c0_4] : memref<1x8x64xf32, #tpu.memory_space<vmem>>, vector<1x8x64xf32>
    %2 = vector.broadcast %1 : vector<1x8x64xf32> to vector<2x8x64xf32>
    %3 = arith.addf %0, %2 : vector<2x8x64xf32>
    %c0_5 = arith.constant 0 : index
    %c0_6 = arith.constant 0 : index
    %c0_7 = arith.constant 0 : index
    %4 = vector.load %arg2[%c0_5, %c0_6, %c0_7] : memref<2x8x64xf32, #tpu.memory_space<vmem>>, vector<2x8x64xf32>
    tpu.vector_store %arg2[%c0_5, %c0_6, %c0_7], %3 {strides = array<i32>} : memref<2x8x64xf32, #tpu.memory_space<vmem>>, vector<2x8x64xf32>,
    return
  }
}

</mosaic_0001>

<llo_original>
// kernel: tpu_custom_call.1
$region0: #{tpu_custom_call.1}
  #allocation0 [shape = 'u32[]', space=smem, size = 0x4, offset = 0x4, fixed_abs, tag = 'smem constant byte address 0x4 - core index']
  #allocation1 [shape = 'u32[72,128]{1,0:T(1,128)}', space=vmem, size = 0x9000, scoped, tag = 'internal scratch']
  %s0 = inlined_call_operand.hbm [shape: f32[2,8,64], index: 0, kind: input, shape index: {}]
  %s1 = inlined_call_operand.hbm [shape: f32[1,8,64], index: 1, kind: input, shape index: {}]
  %s2 = inlined_call_operand.hbm [shape: f32[2,8,64], index: 2, kind: output, shape index: {}]
  %s3 = sld [smem:[#allocation0]]
  $region26: #{tpu_custom_call.1} parent=0
    _
  %s5 = ssub.s32 1, %s3
  %s6 = scalar_select 0, %s5, %s3
  $region1: #{tpu_custom_call.1} parent=0
    #allocation2 [shape = 'u8[8192]{0}', space=vmem, size = 0x2000, scoped, tag = 'input window, operand 0, single buffered']
    #allocation3 [shape = 's32[1]{0}', space=sflag, size = 0x4, scoped, tag = 'scoped memory for tpu_custom_call.1']
    #allocation4 [shape = 's32[1]{0}', space=sflag, size = 0x4, scoped, tag = 'scoped memory for tpu_custom_call.1']
    #allocation5 [shape = 'u8[4096]{0}', space=vmem, size = 0x1000, scoped, tag = 'input window, operand 1, single buffered']
    #allocation6 [shape = 's32[1]{0}', space=sflag, size = 0x4, scoped, tag = 'scoped memory for tpu_custom_call.1']
    #allocation7 [shape = 'u8[8192]{0}', space=vmem, size = 0x2000, scoped, tag = 'output window, operand 0, single buffered']
    %7 = vsyncpa [#allocation3], 0
    %8 = vsyncpa [#allocation6], 0
    %9 = vsyncpa [#allocation4], 0
    // Predicated region
    $region2: #{tpu_custom_call.1} parent=1 // pred_check
      _
    $region3: #{tpu_custom_call.1} parent=1 // pred_check_branch
      %11 = sbr.rel (0) target = $region5
    $region4: #{tpu_custom_call.1} parent=1 // pred_region
      %13 = vsyncadd [#allocation3], 0
      %s14 = sshll.u32 %s0, 4
      %s15 = int_to_ptr.hbm [resolvable:$true] %s14
      %s16 = sshll.u32 [#allocation2], 4
      %s17 = int_to_ptr.vmem [resolvable:$true] %s16
      %22 = dma.hbm_to_vmem [thread:$0]  %s15, 256, %s17, [#allocation3], 128, 128, 8
    $region5: #{tpu_custom_call.1} parent=1 // pred_fallthru
      _
    // Predicated region
    $region6: #{tpu_custom_call.1} parent=1 // pred_check
      _
    $region7: #{tpu_custom_call.1} parent=1 // pred_check_branch
      %24 = sbr.rel (0) target = $region9
    $region8: #{tpu_custom_call.1} parent=1 // pred_region
      %26 = vsyncadd [#allocation6], 0
      %s28 = sshll.u32 %s1, 4
      %s29 = int_to_ptr.hbm [resolvable:$true] %s28
      %s30 = sshll.u32 [#allocation5], 4
      %s31 = int_to_ptr.vmem [resolvable:$true] %s30
      %33 = dma.hbm_to_vmem [thread:$0]  %s29, 128, %s31, [#allocation6]
    $region9: #{tpu_custom_call.1} parent=1 // pred_fallthru
      _
    // Predicated region
    $region10: #{tpu_custom_call.1} parent=1 // pred_check
      _
    $region11: #{tpu_custom_call.1} parent=1 // pred_check_branch
      %35 = sbr.rel (0) target = $region13
    $region12: #{tpu_custom_call.1} parent=1 // pred_region
      %37 = dma.done [#allocation3], 256
    $region13: #{tpu_custom_call.1} parent=1 // pred_fallthru
      _
    // Predicated region
    $region14: #{tpu_custom_call.1} parent=1 // pred_check
      _
    $region15: #{tpu_custom_call.1} parent=1 // pred_check_branch
      %39 = sbr.rel (0) target = $region17
    $region16: #{tpu_custom_call.1} parent=1 // pred_region
      %41 = dma.done [#allocation6], 128
    $region17: #{tpu_custom_call.1} parent=1 // pred_fallthru
      _
    %v42 = vld [vmem:[#allocation2] sm:$0xff]
    %v43 = vld [vmem:[#allocation2 + $0x8] sm:$0xff]
    %v44 = vld [vmem:[#allocation5] sm:$0xff]
    %v45 = vadd.f32 %v42, %v44
    %v46 = vadd.f32 %v43, %v44
    %vm47 = vcmask 523264
    %48 = vst.msk [vmem:[#allocation7] sm:$0xff] %vm47, %v45
    %49 = vst.msk [vmem:[#allocation7 + $0x8] sm:$0xff] %vm47, %v46
    // Predicated region
    $region18: #{tpu_custom_call.1} parent=1 // pred_check
      _
    $region19: #{tpu_custom_call.1} parent=1 // pred_check_branch
      %51 = sbr.rel (0) target = $region21
    $region20: #{tpu_custom_call.1} parent=1 // pred_region
      %53 = vsyncadd [#allocation4], 0
      %s54 = sshll.u32 [#allocation7], 4
      %s55 = int_to_ptr.vmem [resolvable:$true] %s54
      %s56 = sshll.u32 %s2, 4
      %s57 = int_to_ptr.hbm [resolvable:$true] %s56
      %62 = dma.vmem_to_hbm [thread:$0]  %s55, 256, %s57, [#allocation4], 128, 128, 8
    $region21: #{tpu_custom_call.1} parent=1 // pred_fallthru
      _
    // Predicated region
    $region22: #{tpu_custom_call.1} parent=1 // pred_check
      _
    $region23: #{tpu_custom_call.1} parent=1 // pred_check_branch
      %64 = sbr.rel (0) target = $region25
    $region24: #{tpu_custom_call.1} parent=1 // pred_region
      %66 = dma.done [#allocation4], 256
    $region25: #{tpu_custom_call.1} parent=1 // pred_fallthru
      _
    %67 = vsyncpa [#allocation3], 1
    %68 = vsyncpa [#allocation6], 1
    %69 = vsyncpa [#allocation4], 1

</llo_original>
